<compile_context>
chip_gen: v7x
topology: tpu7x:2x2x1
jax: 0.10.0
libtpu: 0.0.40
codegen_flags: <defaults>
</compile_context>

<pallas_src>
import functools

import jax
import jax.numpy as jnp
from jax.experimental import pallas as pl
from jax.experimental.pallas import tpu as pltpu


# ----------------------------------------------------------------------------- kernel

def decoder_kernel(act_ref, w_big_ref, w_fcw1_ref, w2_ref, bias_ref, out_ref,
                   *, H, D, Opad):
    # act_ref   : (TB, H+F+1+S)   [xin | climate | 1 | l]
    # w_big_ref : (H+F+1+S, 3H+D+H)  block matrix producing [r|z|n | h1_partial | l_rep]
    # w_fcw1_ref: (H, D)          tile(W_fc^T) @ W1[:, :C]^T   (pre-collapsed)
    # w2_ref    : (D, Opad)       W2^T padded to 128 lanes
    # bias_ref  : (8, Wb)         row0 = b_hn, row1 = b_lin2 (padded)
    # out_ref   : (TB, Opad)
    big = jnp.dot(act_ref[...], w_big_ref[...], preferred_element_type=jnp.float32)

    # GRU single step, h0 = 0.  Gate biases already folded into the constant-1 row.
    r = jax.nn.sigmoid(big[:, 0:H])
    z = jax.nn.sigmoid(big[:, H:2 * H])
    n = jnp.tanh(big[:, 2 * H:3 * H] + r * bias_ref[0:1, :H])
    gru_out = (1.0 - z) * n                                      # (TB, H)

    # fc -> permute -> bmm(l) -> cat(embed) -> linear, all algebraically folded:
    #   h1 = (gru*l_rep) @ (wfc_exp@W1a) + [climate@(W_emb^T@W1b) + sum(l)*b_fc@W1a
    #                                       + b_emb@W1b + b1]     <- all in big[:,3H:3H+D]
    weighted = gru_out * big[:, 3 * H + D:3 * H + D + H]         # gru * l_rep
    h1 = (jnp.dot(weighted, w_fcw1_ref[...], preferred_element_type=jnp.float32)
          + big[:, 3 * H:3 * H + D])
    h1 = jnp.maximum(h1, 0.0)

    out_ref[...] = (jnp.dot(h1, w2_ref[...], preferred_element_type=jnp.float32)
                    + bias_ref[1:2, :Opad])


# --------------------------------------------------------------------------- params

def init_params(key, in_ft, out_ft, cnn_hid_dim, fc_hid_dim, n_features, num_input_stat):
    num_stat = num_input_stat - 1
    H = in_ft * num_stat
    ks = jax.random.split(key, 12)

    def u(k, shape, fan_in):
        b = 1.0 / jnp.sqrt(jnp.float32(fan_in))
        return jax.random.uniform(k, shape, jnp.float32, -b, b)

    return dict(
        w_ih=u(ks[0], (3 * H, H), H),     # GRU weight_ih_l0, gate order [r, z, n]
        w_hh=u(ks[1], (3 * H, H), H),     # unused at h0 = 0, kept for fidelity
        b_ih=u(ks[2], (3 * H,), H),
        b_hh=u(ks[3], (3 * H,), H),
        w_embed=u(ks[4], (cnn_hid_dim, n_features), n_features),
        b_embed=u(ks[5], (cnn_hid_dim,), n_features),
        w_lin1=u(ks[6], (fc_hid_dim, 2 * cnn_hid_dim), 2 * cnn_hid_dim),
        b_lin1=u(ks[7], (fc_hid_dim,), 2 * cnn_hid_dim),
        w_lin2=u(ks[8], (out_ft, fc_hid_dim), fc_hid_dim),
        b_lin2=u(ks[9], (out_ft,), fc_hid_dim),
        w_fc=u(ks[10], (cnn_hid_dim, in_ft), in_ft),
        b_fc=u(ks[11], (cnn_hid_dim,), in_ft),
    )


def _round_up(x, m):
    return -(-x // m) * m


def prepare_decoder_params(params, *, in_ft, num_stat, dtype=jnp.float32):
    """One-time parameter glue: all transposes, tiles, algebraic folds (hoisted out of
    the per-call path).  `dtype` controls the streamed big-weight / activation dtype
    (bf16 halves HBM traffic on v6e/v7x); small weights & biases stay f32."""
    H = in_ft * num_stat
    S = num_stat
    C = params["w_fc"].shape[0]
    F = params["w_embed"].shape[1]
    D = params["w_lin1"].shape[0]
    O = params["w_lin2"].shape[0]
    Opad = max(128, _round_up(O, 128))

    w1_t = params["w_lin1"].T.astype(jnp.float32)                # (2C, D)
    w1a, w1b = w1_t[:C], w1_t[C:]                                # (C, D) each

    # ---- big block matrix:  [xin | climate | 1 | l] @ w_big -> [r|z|n | h1_part | l_rep]
    Kact = H + F + 1 + S
    Nbig = 3 * H + D + H
    b_ih, b_hh = params["b_ih"], params["b_hh"]
    w_big = jnp.zeros((Kact, Nbig), jnp.float32)
    w_big = w_big.at[:H, :3 * H].set(params["w_ih"].T)           # xin -> gate pre-acts
    w_big = w_big.at[H:H + F, 3 * H:3 * H + D].set(              # climate -> h1 partial
        params["w_embed"].T @ w1b)
    ones_row = jnp.concatenate([
        b_ih[:H] + b_hh[:H],                                     # b_r = b_ir + b_hr
        b_ih[H:2 * H] + b_hh[H:2 * H],                           # b_z = b_iz + b_hz
        b_ih[2 * H:3 * H],                                       # b_in
        params["b_embed"] @ w1b + params["b_lin1"],              # b_emb@W1b + b1
        jnp.zeros((H,), jnp.float32),
    ])
    w_big = w_big.at[H + F].set(ones_row)                        # constant-1 row
    bfc_w1 = params["b_fc"] @ w1a                                # (D,)  sum(l)*b_fc@W1a
    w_big = w_big.at[H + F + 1:, 3 * H:3 * H + D].set(jnp.broadcast_to(bfc_w1, (S, D)))
    R = jnp.repeat(jnp.eye(S, dtype=jnp.float32), in_ft, axis=1)  # (S, H) l-repeat matrix
    w_big = w_big.at[H + F + 1:, 3 * H + D:].set(R)

    # ---- collapsed fc->linear weight and lane-padded linear2 weight ----
    wfc_exp = jnp.tile(params["w_fc"].T.astype(jnp.float32), (num_stat, 1))   # (H, C)
    w_fcw1 = wfc_exp @ w1a                                       # (H, D)
    w2_pad = jnp.zeros((D, Opad), jnp.float32).at[:, :O].set(params["w_lin2"].T)

    # ---- bias slab (8 sublanes x 128 lanes, one tiny DMA) ----
    Wb = max(H, Opad)
    bias = jnp.zeros((8, Wb), jnp.float32)
    bias = bias.at[0, :H].set(b_hh[2 * H:3 * H])                 # b_hn (r-scaled in tanh)
    bias = bias.at[1, :O].set(params["b_lin2"])                  # b2

    return dict(w_big=w_big.astype(dtype), w_fcw1=w_fcw1, w2=w2_pad, bias=bias)


# --------------------------------------------------------------------------- wrapper

def _pick_tile_b(B):
    """Batch tile: big (<=1024 rows), row-multiple of 8, and >=2 grid programs whenever
    B >= 16 so v7x megacore can shard the batch axis across both TensorCores."""
    if B < 16:
        return B
    return min(1024, _round_up(-(-B // 2), 8))


@functools.partial(jax.jit, static_argnames=("in_ft", "num_stat", "out_ft"))
def decoder_forward(prep, x, h, l, climate, *, in_ft, num_stat, out_ft):
    B = x.shape[0]
    H = in_ft * num_stat
    Kact = prep["w_big"].shape[0]
    Nbig = prep["w_big"].shape[1]
    D = prep["w_fcw1"].shape[1]
    Opad = prep["w2"].shape[1]
    Wb = prep["bias"].shape[1]
    act_dtype = prep["w_big"].dtype
    act_bytes = jnp.dtype(act_dtype).itemsize

    # ---- input glue: ONE activation slab [xin | climate | 1 | l] ----
    xin = jnp.concatenate([x[:, -1], h[:, -1]], axis=-1).reshape(B, H)
    act = jnp.concatenate(
        [xin.astype(jnp.float32), climate.astype(jnp.float32),
         jnp.ones((B, 1), jnp.float32), l.astype(jnp.float32)],
        axis=-1).astype(act_dtype)                               # (B, Kact)

    tile_b = _pick_tile_b(B)
    grid_b = pl.cdiv(B, tile_b)
    Bpad = grid_b * tile_b
    if Bpad != B:                                                # pad batch, slice after
        act = jnp.pad(act, ((0, Bpad - B), (0, 0)))

    kernel = functools.partial(decoder_kernel, H=H, D=D, Opad=Opad)
    cost = pl.CostEstimate(
        flops=2 * Bpad * (Kact * Nbig + H * D + D * Opad),
        transcendentals=3 * Bpad * H,
        bytes_accessed=(Bpad * Kact * act_bytes + Bpad * Opad * 4
                        + Kact * Nbig * act_bytes + (H * D + D * Opad + 8 * Wb) * 4),
    )

    out = pl.pallas_call(
        kernel,
        out_shape=jax.ShapeDtypeStruct((Bpad, Opad), jnp.float32),
        grid=(grid_b,),
        in_specs=[
            pl.BlockSpec((tile_b, Kact), lambda i: (i, 0)),      # activations: batch-tiled
            pl.BlockSpec((Kact, Nbig), lambda i: (0, 0)),        # weights: VMEM-resident
            pl.BlockSpec((H, D), lambda i: (0, 0)),
            pl.BlockSpec((D, Opad), lambda i: (0, 0)),
            pl.BlockSpec((8, Wb), lambda i: (0, 0)),
        ],
        out_specs=pl.BlockSpec((tile_b, Opad), lambda i: (i, 0)),  # lane-dense output
        compiler_params=pltpu.CompilerParams(dimension_semantics=("parallel",)),
        cost_estimate=cost,
    )(act, prep["w_big"], prep["w_fcw1"], prep["w2"], prep["bias"])

    return out[:B, :out_ft]                                      # drop pad rows / lanes


# --------------------------------------------------------------------------- reference

def reference_forward(params, x, h, l, climate, *, in_ft, num_stat):
    """Pure-JAX transcription of the PyTorch forward (for correctness check)."""
    B = x.shape[0]
    H = in_ft * num_stat
    x_cat = jnp.concatenate([x[:, -1], h[:, -1]], axis=-1).reshape(B, 1, -1)
    xt = x_cat[:, 0]                                             # (B, H)
    gi = xt @ params["w_ih"].T + params["b_ih"]
    gh = jnp.zeros((B, H), jnp.float32) @ params["w_hh"].T + params["b_hh"]
    r = jax.nn.sigmoid(gi[:, :H] + gh[:, :H])
    z = jax.nn.sigmoid(gi[:, H:2 * H] + gh[:, H:2 * H])
    n = jnp.tanh(gi[:, 2 * H:] + r * gh[:, 2 * H:])
    ht = (1.0 - z) * n                                           # h0 = 0
    output = ht[:, None, :].reshape(B, 1, num_stat, -1)
    x_ = output[:, -1]                                           # (B, S, in_ft)
    ret = x_ @ params["w_fc"].T + params["b_fc"]                 # (B, S, C)
    ret = jnp.transpose(ret, (0, 2, 1))                          # (B, C, S)
    ret = jnp.matmul(ret, l[:, :, None]).reshape(B, -1)          # (B, C)
    emb = climate @ params["w_embed"].T + params["b_embed"]
    ret = jnp.concatenate([ret, emb], axis=-1)
    ret = jnp.maximum(ret @ params["w_lin1"].T + params["b_lin1"], 0.0)
    return ret @ params["w_lin2"].T + params["b_lin2"]


# ------------------------------------------------------------------------------ main

if __name__ == "__main__":
    in_ft = 8            # num_ft + latent_dim
    out_ft = 4
    cnn_hid_dim = 32
    fc_hid_dim = 16
    n_features = 7
    num_input_stat = 7
    num_stat = num_input_stat - 1   # 6 stations (n1 - 1)
    num_ft = 4
    latent_dim = in_ft - num_ft
    n_ts = 3

    key = jax.random.PRNGKey(0)
    kp, kx, kh, kl, kc = jax.random.split(key, 5)
    params = init_params(kp, in_ft, out_ft, cnn_hid_dim, fc_hid_dim,
                         n_features, num_input_stat)

    def make_inputs(B):
        x = jax.random.normal(kx, (B, n_ts, num_stat, num_ft), jnp.float32)
        h = jax.random.normal(kh, (B, n_ts, num_stat, latent_dim), jnp.float32)
        l = jax.random.uniform(kl, (B, num_stat), jnp.float32)
        climate = jax.random.normal(kc, (B, n_features), jnp.float32)
        return x, h, l, climate

    # f32 path (default): tight check, small batch (grid=1).
    prep_f32 = prepare_decoder_params(params, in_ft=in_ft, num_stat=num_stat,
                                      dtype=jnp.float32)
    x, h, l, climate = make_inputs(2)
    out = jax.block_until_ready(
        decoder_forward(prep_f32, x, h, l, climate,
                        in_ft=in_ft, num_stat=num_stat, out_ft=out_ft))
    ref = reference_forward(params, x, h, l, climate, in_ft=in_ft, num_stat=num_stat)
    assert out.shape == (2, out_ft), out.shape
    assert jnp.allclose(out, ref, atol=1e-4, rtol=1e-4), (out, ref)

    # f32 path, larger batch (exercises tiling, >=2 grid programs, batch padding).
    xb, hb, lb, cb = make_inputs(100)
    out_b = jax.block_until_ready(
        decoder_forward(prep_f32, xb, hb, lb, cb,
                        in_ft=in_ft, num_stat=num_stat, out_ft=out_ft))
    ref_b = reference_forward(params, xb, hb, lb, cb, in_ft=in_ft, num_stat=num_stat)
    assert out_b.shape == (100, out_ft), out_b.shape
    assert jnp.allclose(out_b, ref_b, atol=1e-4, rtol=1e-4)

    # bf16 streaming path (halved activation/big-weight HBM traffic); looser tolerance.
    prep_bf16 = prepare_decoder_params(params, in_ft=in_ft, num_stat=num_stat,
                                       dtype=jnp.bfloat16)
    out_lp = jax.block_until_ready(
        decoder_forward(prep_bf16, x, h, l, climate,
                        in_ft=in_ft, num_stat=num_stat, out_ft=out_ft))
    assert jnp.allclose(out_lp, ref, atol=1e-1, rtol=1e-1), (out_lp, ref)

    print("KERNEL_OK")
</pallas_src>

<mosaic_0001>
module attributes {stable_mosaic.version = 11 : i64} {
  func.func @decoder_kernel(%arg0: i32, %arg1: memref<2x62xf32, #tpu.memory_space<vmem>>, %arg2: memref<62x208xf32, #tpu.memory_space<vmem>>, %arg3: memref<48x16xf32, #tpu.memory_space<vmem>>, %arg4: memref<16x128xf32, #tpu.memory_space<vmem>>, %arg5: memref<8x128xf32, #tpu.memory_space<vmem>>, %arg6: memref<2x128xf32, #tpu.memory_space<vmem>>) attributes {dimension_semantics = [#tpu.dimension_semantics<parallel>], iteration_bounds = array<i64: 1>, scalar_prefetch = 0 : i64, scratch_operands = 0 : i64, tpu.core_type = #tpu.core_type<tc>, window_params = [{transform_indices = @transform_0, window_bounds = array<i64: 2, 62>}, {pipeline_mode = #tpu.pipeline_mode<synchronous>, transform_indices = @transform_1, window_bounds = array<i64: 62, 208>}, {pipeline_mode = #tpu.pipeline_mode<synchronous>, transform_indices = @transform_2, window_bounds = array<i64: 48, 16>}, {pipeline_mode = #tpu.pipeline_mode<synchronous>, transform_indices = @transform_3, window_bounds = array<i64: 16, 128>}, {pipeline_mode = #tpu.pipeline_mode<synchronous>, transform_indices = @transform_4, window_bounds = array<i64: 8, 128>}, {transform_indices = @transform_5, window_bounds = array<i64: 2, 128>}]} {
    %c0 = arith.constant 0 : index
    %c0_0 = arith.constant 0 : index
    %0 = vector.load %arg1[%c0, %c0_0] : memref<2x62xf32, #tpu.memory_space<vmem>>, vector<2x62xf32>
    %c0_1 = arith.constant 0 : index
    %c0_2 = arith.constant 0 : index
    %1 = vector.load %arg2[%c0_1, %c0_2] : memref<62x208xf32, #tpu.memory_space<vmem>>, vector<62x208xf32>
    %cst = arith.constant dense<0.000000e+00> : vector<2x208xf32>
    %2 = tpu.matmul %0, %1, %cst {dimension_numbers = #tpu.dot_dimension_numbers<[1], [0], [0], [1], [0, 0, 1, 1], [], []>} : vector<2x62xf32>, vector<62x208xf32>, vector<2x208xf32> -> vector<2x208xf32>
    %3 = vector.extract_strided_slice %2 {offsets = [0, 0], sizes = [2, 48], strides = [1, 1]} : vector<2x208xf32> to vector<2x48xf32>
    %4 = arith.negf %3 : vector<2x48xf32>
    %5 = math.exp %4 : vector<2x48xf32>
    %cst_3 = arith.constant 1.000000e+00 : f32
    %6 = vector.broadcast %cst_3 : f32 to vector<2x48xf32>
    %7 = arith.addf %6, %5 : vector<2x48xf32>
    %8 = arith.divf %6, %7 : vector<2x48xf32>
    %9 = vector.extract_strided_slice %2 {offsets = [0, 48], sizes = [2, 48], strides = [1, 1]} : vector<2x208xf32> to vector<2x48xf32>
    %10 = arith.negf %9 : vector<2x48xf32>
    %11 = math.exp %10 : vector<2x48xf32>
    %cst_4 = arith.constant 1.000000e+00 : f32
    %12 = vector.broadcast %cst_4 : f32 to vector<2x48xf32>
    %13 = arith.addf %12, %11 : vector<2x48xf32>
    %14 = arith.divf %12, %13 : vector<2x48xf32>
    %15 = vector.extract_strided_slice %2 {offsets = [0, 96], sizes = [2, 48], strides = [1, 1]} : vector<2x208xf32> to vector<2x48xf32>
    %c0_5 = arith.constant 0 : index
    %c0_6 = arith.constant 0 : index
    %16 = vector.load %arg5[%c0_5, %c0_6] : memref<8x128xf32, #tpu.memory_space<vmem>>, vector<1x48xf32>
    %17 = vector.broadcast %16 : vector<1x48xf32> to vector<2x48xf32>
    %18 = arith.mulf %8, %17 : vector<2x48xf32>
    %19 = arith.addf %15, %18 : vector<2x48xf32>
    %20 = math.tanh %19 : vector<2x48xf32>
    %cst_7 = arith.constant 1.000000e+00 : f32
    %21 = vector.broadcast %cst_7 : f32 to vector<2x48xf32>
    %22 = arith.subf %21, %14 : vector<2x48xf32>
    %23 = arith.mulf %22, %20 : vector<2x48xf32>
    %24 = vector.extract_strided_slice %2 {offsets = [0, 160], sizes = [2, 48], strides = [1, 1]} : vector<2x208xf32> to vector<2x48xf32>
    %25 = arith.mulf %23, %24 : vector<2x48xf32>
    %c0_8 = arith.constant 0 : index
    %c0_9 = arith.constant 0 : index
    %26 = vector.load %arg3[%c0_8, %c0_9] : memref<48x16xf32, #tpu.memory_space<vmem>>, vector<48x16xf32>
    %cst_10 = arith.constant dense<0.000000e+00> : vector<2x16xf32>
    %27 = tpu.matmul %25, %26, %cst_10 {dimension_numbers = #tpu.dot_dimension_numbers<[1], [0], [0], [1], [0, 0, 1, 1], [], []>} : vector<2x48xf32>, vector<48x16xf32>, vector<2x16xf32> -> vector<2x16xf32>
    %28 = vector.extract_strided_slice %2 {offsets = [0, 144], sizes = [2, 16], strides = [1, 1]} : vector<2x208xf32> to vector<2x16xf32>
    %29 = arith.addf %27, %28 : vector<2x16xf32>
    %cst_11 = arith.constant 0.000000e+00 : f32
    %30 = vector.broadcast %cst_11 : f32 to vector<2x16xf32>
    %31 = arith.maximumf %29, %30 : vector<2x16xf32>
    %c0_12 = arith.constant 0 : index
    %c0_13 = arith.constant 0 : index
    %32 = vector.load %arg4[%c0_12, %c0_13] : memref<16x128xf32, #tpu.memory_space<vmem>>, vector<16x128xf32>
    %cst_14 = arith.constant dense<0.000000e+00> : vector<2x128xf32>
    %33 = tpu.matmul %31, %32, %cst_14 {dimension_numbers = #tpu.dot_dimension_numbers<[1], [0], [0], [1], [0, 0, 1, 1], [], []>} : vector<2x16xf32>, vector<16x128xf32>, vector<2x128xf32> -> vector<2x128xf32>
    %c1 = arith.constant 1 : index
    %c0_15 = arith.constant 0 : index
    %34 = vector.load %arg5[%c1, %c0_15] : memref<8x128xf32, #tpu.memory_space<vmem>>, vector<1x128xf32>
    %35 = vector.broadcast %34 : vector<1x128xf32> to vector<2x128xf32>
    %36 = arith.addf %33, %35 : vector<2x128xf32>
    %c0_16 = arith.constant 0 : index
    %c0_17 = arith.constant 0 : index
    %37 = vector.load %arg6[%c0_16, %c0_17] : memref<2x128xf32, #tpu.memory_space<vmem>>, vector<2x128xf32>
    tpu.vector_store %arg6[%c0_16, %c0_17], %36 {strides = array<i32>} : memref<2x128xf32, #tpu.memory_space<vmem>>, vector<2x128xf32>,
    return
  }
  func.func @transform_0(%arg0: i32) -> (i32, i32) {
    %c0_i32 = arith.constant 0 : i32
    %c0_i32_0 = arith.constant 0 : i32
    return %arg0, %c0_i32 : i32, i32
  }
  func.func @transform_1(%arg0: i32) -> (i32, i32) {
    %c0_i32 = arith.constant 0 : i32
    %c0_i32_0 = arith.constant 0 : i32
    %c0_i32_1 = arith.constant 0 : i32
    return %c0_i32, %c0_i32_0 : i32, i32
  }
  func.func @transform_2(%arg0: i32) -> (i32, i32) {
    %c0_i32 = arith.constant 0 : i32
    %c0_i32_0 = arith.constant 0 : i32
    %c0_i32_1 = arith.constant 0 : i32
    return %c0_i32, %c0_i32_0 : i32, i32
  }
  func.func @transform_3(%arg0: i32) -> (i32, i32) {
    %c0_i32 = arith.constant 0 : i32
    %c0_i32_0 = arith.constant 0 : i32
    %c0_i32_1 = arith.constant 0 : i32
    return %c0_i32, %c0_i32_0 : i32, i32
  }
  func.func @transform_4(%arg0: i32) -> (i32, i32) {
    %c0_i32 = arith.constant 0 : i32
    %c0_i32_0 = arith.constant 0 : i32
    %c0_i32_1 = arith.constant 0 : i32
    return %c0_i32, %c0_i32_0 : i32, i32
  }
  func.func @transform_5(%arg0: i32) -> (i32, i32) {
    %c0_i32 = arith.constant 0 : i32
    %c0_i32_0 = arith.constant 0 : i32
    return %arg0, %c0_i32 : i32, i32
  }
}

</mosaic_0001>

<llo_original>
// kernel: decoder_forward.1
$region0: #{decoder_forward.1}
  #allocation0 [shape = 'u32[]', space=smem, size = 0x4, offset = 0x4, fixed_abs, tag = 'smem constant byte address 0x4 - core index']
  #allocation1 [shape = 'u32[144,128]{1,0:T(1,128)}', space=vmem, size = 0x12000, scoped, tag = 'internal scratch']
  %s0 = inlined_call_operand.vmem [shape: f32[2,62], index: 0, kind: input, shape index: {}]
  %s1 = inlined_call_operand.vmem [shape: f32[62,208], index: 1, kind: input, shape index: {}]
  %s2 = inlined_call_operand.vmem [shape: f32[48,16], index: 2, kind: input, shape index: {}]
  %s3 = inlined_call_operand.vmem [shape: f32[16,128], index: 3, kind: input, shape index: {}]
  %s4 = inlined_call_operand.vmem [shape: f32[8,128], index: 4, kind: input, shape index: {}]
  %s5 = inlined_call_operand.hbm [shape: f32[2,128], index: 5, kind: output, shape index: {}]
  %s6 = sld [smem:[#allocation0]]
  $region30: #{decoder_forward.1} parent=0
    _
  %s8 = ssub.s32 1, %s6
  %s9 = scalar_select 0, %s8, %s6
  $region1: #{decoder_forward.1} parent=0
    #allocation2 [shape = 'u8[1024]{0}', space=vmem, size = 0x400, scoped, tag = 'output window, operand 0, single buffered']
    #allocation3 [shape = 's32[1]{0}', space=sflag, size = 0x4, scoped, tag = 'scoped memory for decoder_forward.1']
    %10 = vsyncpa [#allocation3], 0
    // Predicated region
    $region2: #{decoder_forward.1} parent=1 // pred_check
      _
    $region3: #{decoder_forward.1} parent=1 // pred_check_branch
      %12 = sbr.rel (0) target = $region5
    $region4: #{decoder_forward.1} parent=1 // pred_region
      _
    $region5: #{decoder_forward.1} parent=1 // pred_fallthru
      _
    // Predicated region
    $region6: #{decoder_forward.1} parent=1 // pred_check
      _
    $region7: #{decoder_forward.1} parent=1 // pred_check_branch
      %14 = sbr.rel (0) target = $region9
    $region8: #{decoder_forward.1} parent=1 // pred_region
      _
    $region9: #{decoder_forward.1} parent=1 // pred_fallthru
      _
    // Predicated region
    $region10: #{decoder_forward.1} parent=1 // pred_check
      _
    $region11: #{decoder_forward.1} parent=1 // pred_check_branch
      %16 = sbr.rel (0) target = $region13
    $region12: #{decoder_forward.1} parent=1 // pred_region
      _
    $region13: #{decoder_forward.1} parent=1 // pred_fallthru
      _
    // Predicated region
    $region14: #{decoder_forward.1} parent=1 // pred_check
      _
    $region15: #{decoder_forward.1} parent=1 // pred_check_branch
      %18 = sbr.rel (0) target = $region17
    $region16: #{decoder_forward.1} parent=1 // pred_region
      _
    $region17: #{decoder_forward.1} parent=1 // pred_fallthru
      _
    // Predicated region
    $region18: #{decoder_forward.1} parent=1 // pred_check
      _
    $region19: #{decoder_forward.1} parent=1 // pred_check_branch
      %20 = sbr.rel (0) target = $region21
    $region20: #{decoder_forward.1} parent=1 // pred_region
      _
    $region21: #{decoder_forward.1} parent=1 // pred_fallthru
      _
    %v21 = vld [vmem:[%s0] sm:$0x3]
    %v22 = vld [vmem:[%s1] sm:$0xff]
    %v23 = vld [vmem:[%s1 + $0x8] sm:$0xff]
    %v24 = vld [vmem:[%s1 + $0x10] sm:$0xff]
    %v25 = vld [vmem:[%s1 + $0x18] sm:$0xff]
    %v26 = vld [vmem:[%s1 + $0x20] sm:$0xff]
    %v27 = vld [vmem:[%s1 + $0x28] sm:$0xff]
    %v28 = vld [vmem:[%s1 + $0x30] sm:$0xff]
    %v29 = vld [vmem:[%s1 + $0x38] sm:$0xff]
    %v30 = vld [vmem:[%s1 + $0x40] sm:$0xff]
    %v31 = vld [vmem:[%s1 + $0x48] sm:$0xff]
    %v32 = vld [vmem:[%s1 + $0x50] sm:$0xff]
    %v33 = vld [vmem:[%s1 + $0x58] sm:$0xff]
    %v34 = vld [vmem:[%s1 + $0x60] sm:$0xff]
    %v35 = vld [vmem:[%s1 + $0x68] sm:$0xff]
    %v36 = vld [vmem:[%s1 + $0x70] sm:$0x3f]
    %v37 = vld [vmem:[%s1 + $0x78] sm:$0x3f]
    %vm38 = vcmask 506880
    %v40 = vsel %vm38, %v21, 0
    %vm42 = vcmask 1045504
    %v44 = vsel %vm42, %v36, 0
    %v47 = vsel %vm42, %v37, 0
    %49 = vmatprep.subr.mxu0 %v23
    %50 = vmatpush1.msra.mxu0 %v22
    %51 = vmatprep.subr.mxu0 %v25
    %52 = vmatpush1.msra.mxu0 %v24
    %53 = vmatprep.subr.mxu0 %v27
    %54 = vmatpush1.msra.mxu0 %v26
    %55 = vmatprep.subr.mxu0 %v29
    %56 = vmatpush1.msra.mxu0 %v28
    %57 = vmatprep.subr.mxu0 %v31
    %58 = vmatpush1.msra.mxu0 %v30
    %59 = vmatprep.subr.mxu0 %v33
    %60 = vmatpush1.msra.mxu0 %v32
    %61 = vmatprep.subr.mxu0 %v35
    %62 = vmatpush1.msra.mxu0 %v34
    %63 = vmatprep.subr.mxu0 %v47
    %64 = vmatpush1.msra.mxu0 %v44
    %65 = vmatprep.subr.mxu0 0.0
    %66 = vmatpush1.msra.mxu0 0.0
    %67 = vmatprep.subr.mxu0 0.0
    %68 = vmatpush1.msra.mxu0 0.0
    %69 = vmatprep.subr.mxu0 0.0
    %70 = vmatpush1.msra.mxu0 0.0
    %71 = vmatprep.subr.mxu0 0.0
    %72 = vmatpush1.msra.mxu0 0.0
    %73 = vmatprep.subr.mxu0 0.0
    %74 = vmatpush1.msra.mxu0 0.0
    %75 = vmatprep.subr.mxu0 0.0
    %76 = vmatpush1.msra.mxu0 0.0
    %77 = vmatprep.subr.mxu0 0.0
    %78 = vmatpush1.msra.mxu0 0.0
    %79 = vmatprep.subr.mxu0 0.0
    %80 = vmatpush1.msra.mxu0 0.0
    %81 = vmatprep.subr.mxu0 0.0
    %82 = vmatpush1.msra.mxu0 0.0
    %83 = vmatprep.subr.mxu0 0.0
    %84 = vmatpush1.msra.mxu0 0.0
    %85 = vmatprep.subr.mxu0 0.0
    %86 = vmatpush1.msra.mxu0 0.0
    %87 = vmatprep.subr.mxu0 0.0
    %88 = vmatpush1.msra.mxu0 0.0
    %89 = vmatprep.subr.mxu0 0.0
    %90 = vmatpush1.msra.mxu0 0.0
    %91 = vmatprep.subr.mxu0 0.0
    %92 = vmatpush1.msra.mxu0 0.0
    %93 = vmatprep.subr.mxu0 0.0
    %94 = vmatpush1.msra.mxu0 0.0
    %95 = vmatprep.subr.mxu0 0.0
    %96 = vmatpush1.msra.mxu0 0.0
    %97 = vmatprep.subr.mxu0 0.0
    %98 = vmatpush1.msra.mxu0 0.0
    %99 = vmatprep.subr.mxu0 0.0
    %100 = vmatpush1.msra.mxu0 0.0
    %101 = vmatprep.subr.mxu0 0.0
    %102 = vmatpush1.msra.mxu0 0.0
    %103 = vmatprep.subr.mxu0 0.0
    %104 = vmatpush1.msra.mxu0 0.0
    %105 = vmatprep.subr.mxu0 0.0
    %106 = vmatpush1.msra.mxu0 0.0
    %107 = vmatprep.subr.mxu0 0.0
    %108 = vmatpush1.msra.mxu0 0.0
    %109 = vmatprep.subr.mxu0 0.0
    %110 = vmatpush1.msra.mxu0 0.0
    %111 = vmatprep.subr.mxu0 0.0
    %112 = vmatpush1.msra.mxu0 0.0
    %113 = vmatprep.mubr.f32.mxu0 0.0
    %114 = vmatmul.mubr.f32.gmra.mrb[0].mxu0 %v40
    %v115 = vpop.f32.mrb[0].mxu0
    %v116 = vadd.f32 0.0, %v115
    %v117 = vpop.f32.mrb[0].mxu0
    %v118 = vadd.f32 0.0, %v117
    %119 = vdwg.mxu0
    %v120 = vxor.u32 %v116, 2147483648
    %v121 = vmul.f32 %v120, 1.442695
    %v122 = vpow.pop %v121
    %v123 = vadd.f32 %v122, 1.0
    %v124 = vrcp.pop %v123
    %v125 = vmul.f32 1.0, %v124
    %v126 = vld [vmem:[%s4] sm:$0x1]
    %v127 = vlaneseq
    %v128 = vshrl.u32 %v127, 7
    %v129 = vsub.s32 0, %v128
    %v130 = vrot.slane %v126, %v129
    %v131 = vmul.f32 %v125, %v130
    %133 = vrot.lane.b32.xlu0 %v131, 96
    %v134 = vpop.permute.xlu0 %133
    %v136 = vadd.f32 %v116, %v134
    %v137 = vadd.f32 %v118, %v134
    %v138 = vtanh.pop %v136
    %v139 = vtanh.pop %v137
    %v140 = vsub.f32 1.0, %v125
    %143 = vrot.lane.b32.xlu0 %v138, 80
    %v144 = vpop.permute.xlu0 %143
    %145 = vrot.lane.b32.xlu0 %v139, 80
    %v146 = vpop.permute.xlu0 %145
    %vm147 = vcmask 654336
    %v148 = vsel %vm147, %v144, %v146
    %v150 = vmul.f32 %v140, %v148
    %152 = vrot.lane.b32.xlu0 %v118, 16
    %v153 = vpop.permute.xlu0 %152
    %v155 = vmul.f32 %v150, %v153
    %v156 = vld [vmem:[%s2] sm:$0xff]
    %v157 = vld [vmem:[%s2 + $0x8] sm:$0xff]
    %v158 = vld [vmem:[%s2 + $0x10] sm:$0xff]
    %v159 = vld [vmem:[%s2 + $0x18] sm:$0xff]
    %v160 = vld [vmem:[%s2 + $0x20] sm:$0xff]
    %v161 = vld [vmem:[%s2 + $0x28] sm:$0xff]
    %163 = vrot.lane.b32.xlu0 %v155, 80
    %v164 = vpop.permute.xlu0 %163
    %165 = vrot.lane.b32.xlu0 %v118, 112
    %v166 = vpop.permute.xlu0 %165
    %vm168 = vcmask 392192
    %v169 = vsel %vm168, %v164, 0
    %171 = vmatprep.subr.mxu0 0.0
    %172 = vmatpush1.msra.mxu0 %v156
    %173 = vmatprep.subr.mxu0 0.0
    %174 = vmatpush1.msra.mxu0 %v157
    %175 = vmatprep.subr.mxu0 0.0
    %176 = vmatpush1.msra.mxu0 %v158
    %177 = vmatprep.subr.mxu0 0.0
    %178 = vmatpush1.msra.mxu0 %v159
    %179 = vmatprep.subr.mxu0 0.0
    %180 = vmatpush1.msra.mxu0 %v160
    %181 = vmatprep.subr.mxu0 0.0
    %182 = vmatpush1.msra.mxu0 %v161
    %183 = vmatprep.subr.mxu0 0.0
    %184 = vmatpush1.msra.mxu0 0.0
    %185 = vmatprep.subr.mxu0 0.0
    %186 = vmatpush1.msra.mxu0 0.0
    %187 = vmatprep.subr.mxu0 0.0
    %188 = vmatpush1.msra.mxu0 0.0
    %189 = vmatprep.subr.mxu0 0.0
    %190 = vmatpush1.msra.mxu0 0.0
    %191 = vmatprep.subr.mxu0 0.0
    %192 = vmatpush1.msra.mxu0 0.0
    %193 = vmatprep.subr.mxu0 0.0
    %194 = vmatpush1.msra.mxu0 0.0
    %195 = vmatprep.subr.mxu0 0.0
    %196 = vmatpush1.msra.mxu0 0.0
    %197 = vmatprep.subr.mxu0 0.0
    %198 = vmatpush1.msra.mxu0 0.0
    %199 = vmatprep.subr.mxu0 0.0
    %200 = vmatpush1.msra.mxu0 0.0
    %201 = vmatprep.subr.mxu0 0.0
    %202 = vmatpush1.msra.mxu0 0.0
    %203 = vmatprep.subr.mxu0 0.0
    %204 = vmatpush1.msra.mxu0 0.0
    %205 = vmatprep.subr.mxu0 0.0
    %206 = vmatpush1.msra.mxu0 0.0
    %207 = vmatprep.subr.mxu0 0.0
    %208 = vmatpush1.msra.mxu0 0.0
    %209 = vmatprep.subr.mxu0 0.0
    %210 = vmatpush1.msra.mxu0 0.0
    %211 = vmatprep.subr.mxu0 0.0
    %212 = vmatpush1.msra.mxu0 0.0
    %213 = vmatprep.subr.mxu0 0.0
    %214 = vmatpush1.msra.mxu0 0.0
    %215 = vmatprep.subr.mxu0 0.0
    %216 = vmatpush1.msra.mxu0 0.0
    %217 = vmatprep.subr.mxu0 0.0
    %218 = vmatpush1.msra.mxu0 0.0
    %219 = vmatprep.subr.mxu0 0.0
    %220 = vmatpush1.msra.mxu0 0.0
    %221 = vmatprep.subr.mxu0 0.0
    %222 = vmatpush1.msra.mxu0 0.0
    %223 = vmatprep.subr.mxu0 0.0
    %224 = vmatpush1.msra.mxu0 0.0
    %225 = vmatprep.subr.mxu0 0.0
    %226 = vmatpush1.msra.mxu0 0.0
    %227 = vmatprep.subr.mxu0 0.0
    %228 = vmatpush1.msra.mxu0 0.0
    %229 = vmatprep.subr.mxu0 0.0
    %230 = vmatpush1.msra.mxu0 0.0
    %231 = vmatprep.subr.mxu0 0.0
    %232 = vmatpush1.msra.mxu0 0.0
    %233 = vmatprep.subr.mxu0 0.0
    %234 = vmatpush1.msra.mxu0 0.0
    %235 = vmatprep.mubr.f32.mxu0 0.0
    %236 = vmatmul.mubr.f32.gmra.mrb[0].mxu0 %v169
    %v237 = vpop.f32.mrb[0].mxu0
    %v238 = vadd.f32 %v166, %v237
    %v239 = vpop.f32.mrb[0].mxu0
    %240 = vdwg.mxu0
    %v241 = vmax.f32 %v238, 0.0
    %v242 = vld [vmem:[%s3] sm:$0xff]
    %v243 = vld [vmem:[%s3 + $0x8] sm:$0xff]
    %v244 = vld [vmem:[%s4 + $0x1] sm:$0x1]
    %v245 = vlaneseq
    %v246 = vshrl.u32 %v245, 7
    %v247 = vsub.s32 0, %v246
    %v248 = vrot.slane %v244, %v247
    %vm249 = vcmask 130048
    %v251 = vsel %vm249, %v241, 0
    %253 = vmatprep.subr.mxu0 0.0
    %254 = vmatpush1.msra.mxu0 %v242
    %255 = vmatprep.subr.mxu0 0.0
    %256 = vmatpush1.msra.mxu0 %v243
    %257 = vmatprep.subr.mxu0 0.0
    %258 = vmatpush1.msra.mxu0 0.0
    %259 = vmatprep.subr.mxu0 0.0
    %260 = vmatpush1.msra.mxu0 0.0
    %261 = vmatprep.subr.mxu0 0.0
    %262 = vmatpush1.msra.mxu0 0.0
    %263 = vmatprep.subr.mxu0 0.0
    %264 = vmatpush1.msra.mxu0 0.0
    %265 = vmatprep.subr.mxu0 0.0
    %266 = vmatpush1.msra.mxu0 0.0
    %267 = vmatprep.subr.mxu0 0.0
    %268 = vmatpush1.msra.mxu0 0.0
    %269 = vmatprep.subr.mxu0 0.0
    %270 = vmatpush1.msra.mxu0 0.0
    %271 = vmatprep.subr.mxu0 0.0
    %272 = vmatpush1.msra.mxu0 0.0
    %273 = vmatprep.subr.mxu0 0.0
    %274 = vmatpush1.msra.mxu0 0.0
    %275 = vmatprep.subr.mxu0 0.0
    %276 = vmatpush1.msra.mxu0 0.0
    %277 = vmatprep.subr.mxu0 0.0
    %278 = vmatpush1.msra.mxu0 0.0
    %279 = vmatprep.subr.mxu0 0.0
    %280 = vmatpush1.msra.mxu0 0.0
    %281 = vmatprep.subr.mxu0 0.0
    %282 = vmatpush1.msra.mxu0 0.0
    %283 = vmatprep.subr.mxu0 0.0
    %284 = vmatpush1.msra.mxu0 0.0
    %285 = vmatprep.subr.mxu0 0.0
    %286 = vmatpush1.msra.mxu0 0.0
    %287 = vmatprep.subr.mxu0 0.0
    %288 = vmatpush1.msra.mxu0 0.0
    %289 = vmatprep.subr.mxu0 0.0
    %290 = vmatpush1.msra.mxu0 0.0
    %291 = vmatprep.subr.mxu0 0.0
    %292 = vmatpush1.msra.mxu0 0.0
    %293 = vmatprep.subr.mxu0 0.0
    %294 = vmatpush1.msra.mxu0 0.0
    %295 = vmatprep.subr.mxu0 0.0
    %296 = vmatpush1.msra.mxu0 0.0
    %297 = vmatprep.subr.mxu0 0.0
    %298 = vmatpush1.msra.mxu0 0.0
    %299 = vmatprep.subr.mxu0 0.0
    %300 = vmatpush1.msra.mxu0 0.0
    %301 = vmatprep.subr.mxu0 0.0
    %302 = vmatpush1.msra.mxu0 0.0
    %303 = vmatprep.subr.mxu0 0.0
    %304 = vmatpush1.msra.mxu0 0.0
    %305 = vmatprep.subr.mxu0 0.0
    %306 = vmatpush1.msra.mxu0 0.0
    %307 = vmatprep.subr.mxu0 0.0
    %308 = vmatpush1.msra.mxu0 0.0
    %309 = vmatprep.subr.mxu0 0.0
    %310 = vmatpush1.msra.mxu0 0.0
    %311 = vmatprep.subr.mxu0 0.0
    %312 = vmatpush1.msra.mxu0 0.0
    %313 = vmatprep.subr.mxu0 0.0
    %314 = vmatpush1.msra.mxu0 0.0
    %315 = vmatprep.subr.mxu0 0.0
    %316 = vmatpush1.msra.mxu0 0.0
    %317 = vmatprep.mubr.f32.mxu0 0.0
    %318 = vmatmul.mubr.f32.gmra.mrb[0].mxu0 %v251
    %v319 = vpop.f32.mrb[0].mxu0
    %v320 = vadd.f32 %v248, %v319
    %v321 = vpop.f32.mrb[0].mxu0
    %322 = vdwg.mxu0
    %323 = vst [vmem:[#allocation2] sm:$0x3] %v320
    // Predicated region
    $region22: #{decoder_forward.1} parent=1 // pred_check
      _
    $region23: #{decoder_forward.1} parent=1 // pred_check_branch
      %325 = sbr.rel (0) target = $region25
    $region24: #{decoder_forward.1} parent=1 // pred_region
      %s327 = ssub.s32 32, 32
      %328 = vsyncadd [#allocation3], %s327
      %s330 = sshll.u32 [#allocation2], 4
      %s331 = int_to_ptr.vmem [resolvable:$true] %s330
      %333 = dma.vmem_to_hbm [thread:$0]  %s331, 32, %s5, [#allocation3]
    $region25: #{decoder_forward.1} parent=1 // pred_fallthru
      _
    // Predicated region
    $region26: #{decoder_forward.1} parent=1 // pred_check
      _
    $region27: #{decoder_forward.1} parent=1 // pred_check_branch
      %335 = sbr.rel (0) target = $region29
    $region28: #{decoder_forward.1} parent=1 // pred_region
      %336 = dma.done [#allocation3], 32
    $region29: #{decoder_forward.1} parent=1 // pred_fallthru
      _
    %337 = vsyncpa [#allocation3], 1

</llo_original>
